<compile_context>
chip_gen: v7x
topology: tpu7x:2x2x1
jax: 0.10.0
libtpu: 0.0.40
codegen_flags: <defaults>
</compile_context>

<pallas_src>
import jax
import jax.numpy as jnp
from jax.experimental import pallas as pl
from jax.experimental.pallas import tpu as pltpu


def _round_up(x, m):
    return (x + m - 1) // m * m


def _vmem_capacity_bytes():
    """Physical per-core VMEM; falls back to the smallest generation (v7x)."""
    try:
        cap = getattr(pltpu.get_tpu_info(), "vmem_capacity_bytes", None)
        if cap:
            return int(cap)
    except Exception:
        pass
    return 64 << 20


def cbam_kernel(x_ref, w1_ref, b1_ref, w2_ref, b2_ref, o_ref):
    x = x_ref[...]                                            # native dtype
    # hidden = ReLU(x @ W1 + b1)       (MXU, f32 accumulation)
    h = jnp.dot(x.astype(w1_ref.dtype), w1_ref[...],
                preferred_element_type=jnp.float32)
    h = jnp.maximum(h + b1_ref[...].astype(jnp.float32), 0.0)
    # attn = sigmoid(h @ W2 + b2)      (MXU inputs in the weight dtype)
    h = h.astype(w2_ref.dtype)
    a = jnp.dot(h, w2_ref[...], preferred_element_type=jnp.float32)
    a = a + b2_ref[...].astype(jnp.float32)
    # sigmoid via exp + reciprocal: both map to the EUP slot (free vs VALU).
    attn = pl.reciprocal(1.0 + jnp.exp(-a), approx=False)
    # out = x * attn  (multiply in f32, single cast at the store)
    o_ref[...] = (x.astype(jnp.float32) * attn).astype(o_ref.dtype)


def cbam_forward(x, w1, b1, w2, b2, *, tm=None):
    """CBAM forward: x * sigmoid(relu(x @ w1 + b1) @ w2 + b2).

    x:  [..., in_dim] (any leading dims)
    w1: [in_dim, hidden]   b1: [hidden]
    w2: [hidden, in_dim]   b2: [in_dim]
    (PyTorch nn.Linear weights are (out, in); pass them transposed.)
    """
    orig_shape = x.shape
    in_dim = orig_shape[-1]
    hidden = w1.shape[1]
    x2 = x.reshape(-1, in_dim)
    M = x2.shape[0]

    b1 = b1.reshape(1, hidden)
    b2 = b2.reshape(1, in_dim)

    x_item = jnp.dtype(x.dtype).itemsize
    sublane = {4: 8, 2: 16, 1: 32}.get(x_item, 8)

    # ---- per-generation VMEM budget (v7x 64 MiB, v5e/v6e 128 MiB) -----------
    vmem_cap = _vmem_capacity_bytes() - (8 << 20)   # compiler-scratch headroom

    # ---- weight residency ----------------------------------------------------
    w_item = jnp.dtype(w1.dtype).itemsize
    weight_bytes = (2 * in_dim * hidden + in_dim + hidden) * w_item
    # Guard: huge f32 weights would starve the row tile -> hold them in bf16
    # (negligible accuracy impact for this sigmoid gating MLP) and halve both
    # VMEM residency and HBM weight traffic.
    if w_item == 4 and weight_bytes > vmem_cap // 2:
        w1 = w1.astype(jnp.bfloat16)
        w2 = w2.astype(jnp.bfloat16)
        w_item = 2
        weight_bytes = (2 * in_dim * hidden) * w_item + (in_dim + hidden) * 4
    # TODO(synk): if even bf16 weights leave no room for >=128 rows, add a
    # feature-axis grid dimension tiling W2 / output columns.

    # Grid-invariant weights: single VMEM copy only when they are big enough
    # to matter (tiny weights keep default double-buffering -> simplest path).
    single_buffer = weight_bytes > (4 << 20)
    weight_vmem = weight_bytes * (1 if single_buffer else 2)

    # x/out row tiles double-buffered + f32 intermediates (h, attn) per row.
    per_row_vmem = 2 * 2 * in_dim * x_item + (in_dim + hidden) * 4

    # ---- row-tile sizing -------------------------------------------------------
    if tm is None:
        avail = vmem_cap - weight_vmem - (4 << 20)
        tm = max(sublane, avail // per_row_vmem) if avail > 0 else sublane
        tm = min(tm, 1024)                    # diminishing returns past ~1k rows
        # Prefer >= 4 grid steps (>= 2 per TensorCore on v7x megacore) as long
        # as tiles stay >= 256 rows; single-TC chips lose nothing at that size.
        if M >= 4 * 256:
            tm = min(tm, _round_up(pl.cdiv(M, 4), sublane))
    tm = max(sublane, (int(tm) // sublane) * sublane)
    tm = min(tm, _round_up(M, sublane))       # never bigger than the data

    grid = (pl.cdiv(M, tm),)                  # Pallas masks the last partial block

    vmem_limit = int(min(max(weight_vmem + tm * per_row_vmem + (4 << 20),
                             32 << 20),
                         vmem_cap))

    # Advisory cost with true (unpadded) dims; weights read once.
    cost = pl.CostEstimate(
        flops=int(4 * M * in_dim * hidden + 4 * M * in_dim),
        transcendentals=int(M * in_dim),                       # sigmoid exp
        bytes_accessed=int(2 * M * in_dim * x_item + weight_bytes),
    )

    def wspec(shape):
        if single_buffer:
            # grid-invariant operand: one resident VMEM copy is enough
            return pl.BlockSpec(shape, lambda i: (0, 0),
                                pipeline_mode=pl.Buffered(1))
        return pl.BlockSpec(shape, lambda i: (0, 0))

    out = pl.pallas_call(
        cbam_kernel,
        out_shape=jax.ShapeDtypeStruct((M, in_dim), x.dtype),
        grid_spec=pltpu.PrefetchScalarGridSpec(
            num_scalar_prefetch=0,
            grid=grid,
            in_specs=[
                pl.BlockSpec((tm, in_dim), lambda i: (i, 0)),   # x row tile
                wspec((in_dim, hidden)),                        # W1 (full array)
                wspec((1, hidden)),                             # b1
                wspec((hidden, in_dim)),                        # W2 (full array)
                wspec((1, in_dim)),                             # b2
            ],
            out_specs=pl.BlockSpec((tm, in_dim), lambda i: (i, 0)),
        ),
        compiler_params=pltpu.CompilerParams(
            dimension_semantics=("parallel",),
            vmem_limit_bytes=vmem_limit),
        cost_estimate=cost,
    )(x2, w1, b1, w2, b2)

    return out.reshape(orig_shape)


def cbam_reference(x, w1, b1, w2, b2):
    h = jnp.maximum(x @ w1 + b1, 0.0)
    attn = jax.nn.sigmoid(h @ w2 + b2)
    return x * attn


if __name__ == "__main__":
    key = jax.random.PRNGKey(0)
    k_x, k_w1, k_b1, k_w2, k_b2 = jax.random.split(key, 5)

    batch, seq, in_dim = 2, 8, 32            # small demo shapes; in_dim=32 -> hidden=8
    hidden = in_dim // 4

    x = jax.random.normal(k_x, (batch, seq, in_dim), dtype=jnp.float32)

    # Deterministic parameter init (PyTorch Linear weights are (out,in);
    # built here already transposed to (in,out) for the kernel).
    bound1 = 1.0 / (in_dim ** 0.5)
    w1 = jax.random.uniform(k_w1, (in_dim, hidden), jnp.float32, -bound1, bound1)
    b1 = jax.random.uniform(k_b1, (hidden,), jnp.float32, -bound1, bound1)
    bound2 = 1.0 / (hidden ** 0.5)
    w2 = jax.random.uniform(k_w2, (hidden, in_dim), jnp.float32, -bound2, bound2)
    b2 = jax.random.uniform(k_b2, (in_dim,), jnp.float32, -bound2, bound2)

    out = cbam_forward(x, w1, b1, w2, b2)
    out = jax.block_until_ready(out)

    ref = cbam_reference(x, w1, b1, w2, b2)
    assert out.shape == ref.shape, "shape mismatch vs reference"
    assert jnp.allclose(out, ref, atol=2e-5, rtol=2e-5), "mismatch vs reference"

    print("KERNEL_OK")
</pallas_src>

<mosaic_0001>
module attributes {stable_mosaic.version = 11 : i64} {
  func.func @cbam_kernel(%arg0: i32, %arg1: memref<16x32xf32, #tpu.memory_space<vmem>>, %arg2: memref<32x8xf32, #tpu.memory_space<vmem>>, %arg3: memref<1x8xf32, #tpu.memory_space<vmem>>, %arg4: memref<8x32xf32, #tpu.memory_space<vmem>>, %arg5: memref<1x32xf32, #tpu.memory_space<vmem>>, %arg6: memref<16x32xf32, #tpu.memory_space<vmem>>) attributes {dimension_semantics = [#tpu.dimension_semantics<parallel>], iteration_bounds = array<i64: 1>, scalar_prefetch = 0 : i64, scratch_operands = 0 : i64, tpu.core_type = #tpu.core_type<tc>, window_params = [{transform_indices = @transform_0, window_bounds = array<i64: 16, 32>}, {pipeline_mode = #tpu.pipeline_mode<synchronous>, transform_indices = @transform_1, window_bounds = array<i64: 32, 8>}, {pipeline_mode = #tpu.pipeline_mode<synchronous>, transform_indices = @transform_2, window_bounds = array<i64: 1, 8>}, {pipeline_mode = #tpu.pipeline_mode<synchronous>, transform_indices = @transform_3, window_bounds = array<i64: 8, 32>}, {pipeline_mode = #tpu.pipeline_mode<synchronous>, transform_indices = @transform_4, window_bounds = array<i64: 1, 32>}, {transform_indices = @transform_5, window_bounds = array<i64: 16, 32>}]} {
    %c0 = arith.constant 0 : index
    %c0_0 = arith.constant 0 : index
    %0 = vector.load %arg1[%c0, %c0_0] : memref<16x32xf32, #tpu.memory_space<vmem>>, vector<16x32xf32>
    %c0_1 = arith.constant 0 : index
    %c0_2 = arith.constant 0 : index
    %1 = vector.load %arg2[%c0_1, %c0_2] : memref<32x8xf32, #tpu.memory_space<vmem>>, vector<32x8xf32>
    %cst = arith.constant dense<0.000000e+00> : vector<16x8xf32>
    %2 = tpu.matmul %0, %1, %cst {dimension_numbers = #tpu.dot_dimension_numbers<[1], [0], [0], [1], [0, 0, 1, 1], [], []>} : vector<16x32xf32>, vector<32x8xf32>, vector<16x8xf32> -> vector<16x8xf32>
    %c0_3 = arith.constant 0 : index
    %c0_4 = arith.constant 0 : index
    %3 = vector.load %arg3[%c0_3, %c0_4] : memref<1x8xf32, #tpu.memory_space<vmem>>, vector<1x8xf32>
    %4 = vector.broadcast %3 : vector<1x8xf32> to vector<16x8xf32>
    %5 = arith.addf %2, %4 : vector<16x8xf32>
    %cst_5 = arith.constant 0.000000e+00 : f32
    %6 = vector.broadcast %cst_5 : f32 to vector<16x8xf32>
    %7 = arith.maximumf %5, %6 : vector<16x8xf32>
    %c0_6 = arith.constant 0 : index
    %c0_7 = arith.constant 0 : index
    %8 = vector.load %arg4[%c0_6, %c0_7] : memref<8x32xf32, #tpu.memory_space<vmem>>, vector<8x32xf32>
    %cst_8 = arith.constant dense<0.000000e+00> : vector<16x32xf32>
    %9 = tpu.matmul %7, %8, %cst_8 {dimension_numbers = #tpu.dot_dimension_numbers<[1], [0], [0], [1], [0, 0, 1, 1], [], []>} : vector<16x8xf32>, vector<8x32xf32>, vector<16x32xf32> -> vector<16x32xf32>
    %c0_9 = arith.constant 0 : index
    %c0_10 = arith.constant 0 : index
    %10 = vector.load %arg5[%c0_9, %c0_10] : memref<1x32xf32, #tpu.memory_space<vmem>>, vector<1x32xf32>
    %11 = vector.broadcast %10 : vector<1x32xf32> to vector<16x32xf32>
    %12 = arith.addf %9, %11 : vector<16x32xf32>
    %cst_11 = arith.constant 0.000000e+00 : f32
    %13 = vector.broadcast %cst_11 : f32 to vector<16x32xf32>
    %14 = arith.subf %13, %12 : vector<16x32xf32>
    %15 = math.exp %14 : vector<16x32xf32>
    %cst_12 = arith.constant 1.000000e+00 : f32
    %16 = vector.broadcast %cst_12 : f32 to vector<16x32xf32>
    %17 = arith.addf %16, %15 : vector<16x32xf32>
    %18 = tpu.reciprocal %17 : vector<16x32xf32> -> vector<16x32xf32>
    %19 = arith.mulf %0, %18 : vector<16x32xf32>
    %c0_13 = arith.constant 0 : index
    %c0_14 = arith.constant 0 : index
    %20 = vector.load %arg6[%c0_13, %c0_14] : memref<16x32xf32, #tpu.memory_space<vmem>>, vector<16x32xf32>
    tpu.vector_store %arg6[%c0_13, %c0_14], %19 {strides = array<i32>} : memref<16x32xf32, #tpu.memory_space<vmem>>, vector<16x32xf32>,
    return
  }
  func.func @transform_0(%arg0: i32) -> (i32, i32) {
    %c0_i32 = arith.constant 0 : i32
    %c0_i32_0 = arith.constant 0 : i32
    return %arg0, %c0_i32 : i32, i32
  }
  func.func @transform_1(%arg0: i32) -> (i32, i32) {
    %c0_i32 = arith.constant 0 : i32
    %c0_i32_0 = arith.constant 0 : i32
    %c0_i32_1 = arith.constant 0 : i32
    return %c0_i32, %c0_i32_0 : i32, i32
  }
  func.func @transform_2(%arg0: i32) -> (i32, i32) {
    %c0_i32 = arith.constant 0 : i32
    %c0_i32_0 = arith.constant 0 : i32
    %c0_i32_1 = arith.constant 0 : i32
    return %c0_i32, %c0_i32_0 : i32, i32
  }
  func.func @transform_3(%arg0: i32) -> (i32, i32) {
    %c0_i32 = arith.constant 0 : i32
    %c0_i32_0 = arith.constant 0 : i32
    %c0_i32_1 = arith.constant 0 : i32
    return %c0_i32, %c0_i32_0 : i32, i32
  }
  func.func @transform_4(%arg0: i32) -> (i32, i32) {
    %c0_i32 = arith.constant 0 : i32
    %c0_i32_0 = arith.constant 0 : i32
    %c0_i32_1 = arith.constant 0 : i32
    return %c0_i32, %c0_i32_0 : i32, i32
  }
  func.func @transform_5(%arg0: i32) -> (i32, i32) {
    %c0_i32 = arith.constant 0 : i32
    %c0_i32_0 = arith.constant 0 : i32
    return %arg0, %c0_i32 : i32, i32
  }
}

</mosaic_0001>

<llo_original>
// kernel: tpu_custom_call.1
$region0: #{tpu_custom_call.1}
  #allocation0 [shape = 'u32[]', space=smem, size = 0x4, offset = 0x4, fixed_abs, tag = 'smem constant byte address 0x4 - core index']
  #allocation1 [shape = 'u32[144,128]{1,0:T(1,128)}', space=vmem, size = 0x12000, scoped, tag = 'internal scratch']
  %s0 = inlined_call_operand.vmem [shape: f32[16,32], index: 0, kind: input, shape index: {}]
  %s1 = inlined_call_operand.vmem [shape: f32[32,8], index: 1, kind: input, shape index: {}]
  %s2 = inlined_call_operand.vmem [shape: f32[1,8], index: 2, kind: input, shape index: {}]
  %s3 = inlined_call_operand.vmem [shape: f32[8,32], index: 3, kind: input, shape index: {}]
  %s4 = inlined_call_operand.vmem [shape: f32[1,32], index: 4, kind: input, shape index: {}]
  %s5 = inlined_call_operand.hbm [shape: f32[16,32], index: 5, kind: output, shape index: {}]
  %s6 = sld [smem:[#allocation0]]
  $region30: #{tpu_custom_call.1} parent=0
    _
  %s8 = ssub.s32 1, %s6
  %s9 = scalar_select 0, %s8, %s6
  $region1: #{tpu_custom_call.1} parent=0
    #allocation2 [shape = 'u8[8192]{0}', space=vmem, size = 0x2000, scoped, tag = 'output window, operand 0, single buffered']
    #allocation3 [shape = 's32[1]{0}', space=sflag, size = 0x4, scoped, tag = 'scoped memory for tpu_custom_call.1']
    %10 = vsyncpa [#allocation3], 0
    // Predicated region
    $region2: #{tpu_custom_call.1} parent=1 // pred_check
      _
    $region3: #{tpu_custom_call.1} parent=1 // pred_check_branch
      %12 = sbr.rel (0) target = $region5
    $region4: #{tpu_custom_call.1} parent=1 // pred_region
      _
    $region5: #{tpu_custom_call.1} parent=1 // pred_fallthru
      _
    // Predicated region
    $region6: #{tpu_custom_call.1} parent=1 // pred_check
      _
    $region7: #{tpu_custom_call.1} parent=1 // pred_check_branch
      %14 = sbr.rel (0) target = $region9
    $region8: #{tpu_custom_call.1} parent=1 // pred_region
      _
    $region9: #{tpu_custom_call.1} parent=1 // pred_fallthru
      _
    // Predicated region
    $region10: #{tpu_custom_call.1} parent=1 // pred_check
      _
    $region11: #{tpu_custom_call.1} parent=1 // pred_check_branch
      %16 = sbr.rel (0) target = $region13
    $region12: #{tpu_custom_call.1} parent=1 // pred_region
      _
    $region13: #{tpu_custom_call.1} parent=1 // pred_fallthru
      _
    // Predicated region
    $region14: #{tpu_custom_call.1} parent=1 // pred_check
      _
    $region15: #{tpu_custom_call.1} parent=1 // pred_check_branch
      %18 = sbr.rel (0) target = $region17
    $region16: #{tpu_custom_call.1} parent=1 // pred_region
      _
    $region17: #{tpu_custom_call.1} parent=1 // pred_fallthru
      _
    // Predicated region
    $region18: #{tpu_custom_call.1} parent=1 // pred_check
      _
    $region19: #{tpu_custom_call.1} parent=1 // pred_check_branch
      %20 = sbr.rel (0) target = $region21
    $region20: #{tpu_custom_call.1} parent=1 // pred_region
      _
    $region21: #{tpu_custom_call.1} parent=1 // pred_fallthru
      _
    %v21 = vld [vmem:[%s0] sm:$0xff]
    %v22 = vld [vmem:[%s0 + $0x8] sm:$0xff]
    %v23 = vld [vmem:[%s1] sm:$0xff]
    %v24 = vld [vmem:[%s1 + $0x8] sm:$0xff]
    %v25 = vld [vmem:[%s1 + $0x10] sm:$0xff]
    %v26 = vld [vmem:[%s1 + $0x18] sm:$0xff]
    %v27 = vld [vmem:[%s2] sm:$0x1]
    %v29 = vlaneseq
    %v30 = vshrl.u32 %v29, 7
    %v31 = vsub.s32 0, %v30
    %v32 = vrot.slane %v27, %v31
    %vm34 = vcmask 261120
    %v36 = vsel %vm34, %v21, 0
    %v39 = vsel %vm34, %v22, 0
    %41 = vmatprep.subr.mxu0 0.0
    %42 = vmatpush1.msra.mxu0 %v23
    %43 = vmatprep.subr.mxu0 0.0
    %44 = vmatpush1.msra.mxu0 %v24
    %45 = vmatprep.subr.mxu0 0.0
    %46 = vmatpush1.msra.mxu0 %v25
    %47 = vmatprep.subr.mxu0 0.0
    %48 = vmatpush1.msra.mxu0 %v26
    %49 = vmatprep.subr.mxu0 0.0
    %50 = vmatpush1.msra.mxu0 0.0
    %51 = vmatprep.subr.mxu0 0.0
    %52 = vmatpush1.msra.mxu0 0.0
    %53 = vmatprep.subr.mxu0 0.0
    %54 = vmatpush1.msra.mxu0 0.0
    %55 = vmatprep.subr.mxu0 0.0
    %56 = vmatpush1.msra.mxu0 0.0
    %57 = vmatprep.subr.mxu0 0.0
    %58 = vmatpush1.msra.mxu0 0.0
    %59 = vmatprep.subr.mxu0 0.0
    %60 = vmatpush1.msra.mxu0 0.0
    %61 = vmatprep.subr.mxu0 0.0
    %62 = vmatpush1.msra.mxu0 0.0
    %63 = vmatprep.subr.mxu0 0.0
    %64 = vmatpush1.msra.mxu0 0.0
    %65 = vmatprep.subr.mxu0 0.0
    %66 = vmatpush1.msra.mxu0 0.0
    %67 = vmatprep.subr.mxu0 0.0
    %68 = vmatpush1.msra.mxu0 0.0
    %69 = vmatprep.subr.mxu0 0.0
    %70 = vmatpush1.msra.mxu0 0.0
    %71 = vmatprep.subr.mxu0 0.0
    %72 = vmatpush1.msra.mxu0 0.0
    %73 = vmatprep.subr.mxu0 0.0
    %74 = vmatpush1.msra.mxu0 0.0
    %75 = vmatprep.subr.mxu0 0.0
    %76 = vmatpush1.msra.mxu0 0.0
    %77 = vmatprep.subr.mxu0 0.0
    %78 = vmatpush1.msra.mxu0 0.0
    %79 = vmatprep.subr.mxu0 0.0
    %80 = vmatpush1.msra.mxu0 0.0
    %81 = vmatprep.subr.mxu0 0.0
    %82 = vmatpush1.msra.mxu0 0.0
    %83 = vmatprep.subr.mxu0 0.0
    %84 = vmatpush1.msra.mxu0 0.0
    %85 = vmatprep.subr.mxu0 0.0
    %86 = vmatpush1.msra.mxu0 0.0
    %87 = vmatprep.subr.mxu0 0.0
    %88 = vmatpush1.msra.mxu0 0.0
    %89 = vmatprep.subr.mxu0 0.0
    %90 = vmatpush1.msra.mxu0 0.0
    %91 = vmatprep.subr.mxu0 0.0
    %92 = vmatpush1.msra.mxu0 0.0
    %93 = vmatprep.subr.mxu0 0.0
    %94 = vmatpush1.msra.mxu0 0.0
    %95 = vmatprep.subr.mxu0 0.0
    %96 = vmatpush1.msra.mxu0 0.0
    %97 = vmatprep.subr.mxu0 0.0
    %98 = vmatpush1.msra.mxu0 0.0
    %99 = vmatprep.subr.mxu0 0.0
    %100 = vmatpush1.msra.mxu0 0.0
    %101 = vmatprep.subr.mxu0 0.0
    %102 = vmatpush1.msra.mxu0 0.0
    %103 = vmatprep.subr.mxu0 0.0
    %104 = vmatpush1.msra.mxu0 0.0
    %105 = vmatprep.mubr.f32.mxu0 0.0
    %106 = vmatmul.mubr.f32.gmra.mrb[0].mxu0 %v36
    %v107 = vpop.f32.mrb[0].mxu0
    %v108 = vadd.f32 %v32, %v107
    %v109 = vpop.f32.mrb[0].mxu0
    %110 = vmatprep.mubr.f32.mxu0 0.0
    %111 = vmatmul.mubr.f32.gmra.mrb[0].mxu0 %v39
    %v112 = vpop.f32.mrb[0].mxu0
    %v113 = vadd.f32 %v32, %v112
    %v114 = vpop.f32.mrb[0].mxu0
    %115 = vdwg.mxu0
    %v116 = vmax.f32 %v108, 0.0
    %v117 = vmax.f32 %v113, 0.0
    %v118 = vld [vmem:[%s3] sm:$0xff]
    %v119 = vld [vmem:[%s4] sm:$0x1]
    %v121 = vlaneseq
    %v122 = vshrl.u32 %v121, 7
    %v123 = vsub.s32 0, %v122
    %v124 = vrot.slane %v119, %v123
    %vm126 = vcmask 64512
    %v128 = vsel %vm126, %v116, 0
    %v131 = vsel %vm126, %v117, 0
    %133 = vmatprep.subr.mxu0 0.0
    %134 = vmatpush1.msra.mxu0 %v118
    %135 = vmatprep.subr.mxu0 0.0
    %136 = vmatpush1.msra.mxu0 0.0
    %137 = vmatprep.subr.mxu0 0.0
    %138 = vmatpush1.msra.mxu0 0.0
    %139 = vmatprep.subr.mxu0 0.0
    %140 = vmatpush1.msra.mxu0 0.0
    %141 = vmatprep.subr.mxu0 0.0
    %142 = vmatpush1.msra.mxu0 0.0
    %143 = vmatprep.subr.mxu0 0.0
    %144 = vmatpush1.msra.mxu0 0.0
    %145 = vmatprep.subr.mxu0 0.0
    %146 = vmatpush1.msra.mxu0 0.0
    %147 = vmatprep.subr.mxu0 0.0
    %148 = vmatpush1.msra.mxu0 0.0
    %149 = vmatprep.subr.mxu0 0.0
    %150 = vmatpush1.msra.mxu0 0.0
    %151 = vmatprep.subr.mxu0 0.0
    %152 = vmatpush1.msra.mxu0 0.0
    %153 = vmatprep.subr.mxu0 0.0
    %154 = vmatpush1.msra.mxu0 0.0
    %155 = vmatprep.subr.mxu0 0.0
    %156 = vmatpush1.msra.mxu0 0.0
    %157 = vmatprep.subr.mxu0 0.0
    %158 = vmatpush1.msra.mxu0 0.0
    %159 = vmatprep.subr.mxu0 0.0
    %160 = vmatpush1.msra.mxu0 0.0
    %161 = vmatprep.subr.mxu0 0.0
    %162 = vmatpush1.msra.mxu0 0.0
    %163 = vmatprep.subr.mxu0 0.0
    %164 = vmatpush1.msra.mxu0 0.0
    %165 = vmatprep.subr.mxu0 0.0
    %166 = vmatpush1.msra.mxu0 0.0
    %167 = vmatprep.subr.mxu0 0.0
    %168 = vmatpush1.msra.mxu0 0.0
    %169 = vmatprep.subr.mxu0 0.0
    %170 = vmatpush1.msra.mxu0 0.0
    %171 = vmatprep.subr.mxu0 0.0
    %172 = vmatpush1.msra.mxu0 0.0
    %173 = vmatprep.subr.mxu0 0.0
    %174 = vmatpush1.msra.mxu0 0.0
    %175 = vmatprep.subr.mxu0 0.0
    %176 = vmatpush1.msra.mxu0 0.0
    %177 = vmatprep.subr.mxu0 0.0
    %178 = vmatpush1.msra.mxu0 0.0
    %179 = vmatprep.subr.mxu0 0.0
    %180 = vmatpush1.msra.mxu0 0.0
    %181 = vmatprep.subr.mxu0 0.0
    %182 = vmatpush1.msra.mxu0 0.0
    %183 = vmatprep.subr.mxu0 0.0
    %184 = vmatpush1.msra.mxu0 0.0
    %185 = vmatprep.subr.mxu0 0.0
    %186 = vmatpush1.msra.mxu0 0.0
    %187 = vmatprep.subr.mxu0 0.0
    %188 = vmatpush1.msra.mxu0 0.0
    %189 = vmatprep.subr.mxu0 0.0
    %190 = vmatpush1.msra.mxu0 0.0
    %191 = vmatprep.subr.mxu0 0.0
    %192 = vmatpush1.msra.mxu0 0.0
    %193 = vmatprep.subr.mxu0 0.0
    %194 = vmatpush1.msra.mxu0 0.0
    %195 = vmatprep.subr.mxu0 0.0
    %196 = vmatpush1.msra.mxu0 0.0
    %197 = vmatprep.mubr.f32.mxu0 0.0
    %198 = vmatmul.mubr.f32.gmra.mrb[0].mxu0 %v128
    %v199 = vpop.f32.mrb[0].mxu0
    %v200 = vadd.f32 %v124, %v199
    %v201 = vpop.f32.mrb[0].mxu0
    %202 = vmatprep.mubr.f32.mxu0 0.0
    %203 = vmatmul.mubr.f32.gmra.mrb[0].mxu0 %v131
    %v204 = vpop.f32.mrb[0].mxu0
    %v205 = vadd.f32 %v124, %v204
    %v206 = vpop.f32.mrb[0].mxu0
    %207 = vdwg.mxu0
    %v208 = vsub.f32 0.0, %v200
    %v209 = vsub.f32 0.0, %v205
    %v210 = vmul.f32 %v208, 1.442695
    %v211 = vpow.pop %v210
    %v212 = vmul.f32 %v209, 1.442695
    %v213 = vpow.pop %v212
    %v214 = vadd.f32 %v211, 1.0
    %v215 = vadd.f32 %v213, 1.0
    %v216 = vrcp.pop %v214
    %v217 = vrcp.pop %v215
    %v218 = vmul.f32 %v21, %v216
    %v219 = vmul.f32 %v22, %v217
    %220 = vst.msk [vmem:[#allocation2] sm:$0xff] %vm34, %v218
    %221 = vst.msk [vmem:[#allocation2 + $0x8] sm:$0xff] %vm34, %v219
    // Predicated region
    $region22: #{tpu_custom_call.1} parent=1 // pred_check
      _
    $region23: #{tpu_custom_call.1} parent=1 // pred_check_branch
      %223 = sbr.rel (0) target = $region25
    $region24: #{tpu_custom_call.1} parent=1 // pred_region
      %s225 = ssub.s32 256, 256
      %226 = vsyncadd [#allocation3], %s225
      %s227 = sshll.u32 [#allocation2], 4
      %s228 = int_to_ptr.vmem [resolvable:$true] %s227
      %233 = dma.vmem_to_hbm [thread:$0]  %s228, 256, %s5, [#allocation3], 128, 128, 8
    $region25: #{tpu_custom_call.1} parent=1 // pred_fallthru
      _
    // Predicated region
    $region26: #{tpu_custom_call.1} parent=1 // pred_check
      _
    $region27: #{tpu_custom_call.1} parent=1 // pred_check_branch
      %235 = sbr.rel (0) target = $region29
    $region28: #{tpu_custom_call.1} parent=1 // pred_region
      %236 = dma.done [#allocation3], 256
    $region29: #{tpu_custom_call.1} parent=1 // pred_fallthru
      _
    %237 = vsyncpa [#allocation3], 1

</llo_original>
